<compile_context>
chip_gen: v6e
topology: v6e:2x2x1
jax: 0.10.0
libtpu: 0.0.40
codegen_flags: <defaults>
</compile_context>

<pallas_src>
import jax
import jax.numpy as jnp
import numpy as np
from jax.experimental import pallas as pl
from jax.experimental.pallas import tpu as pltpu


def _make_geoconv_kernel(inner_radius, outer_radius):
    ir2 = float(inner_radius) ** 2
    or2 = float(outer_radius) ** 2
    inv_span = 1.0 / (or2 - ir2)

    def kernel(points_ref, xyz_ref, w_dir_ref, bn1_scale_ref, bn1_bias_ref,
               w2_ref, bn2_scale_ref, bn2_bias_ref, out_ref):
        pts = points_ref[...]                                   # (Bt, N, F)
        xyz = xyz_ref[...]                                      # (Bt, N, 3)

        # ---------------- aggregate() weights (VPU / EUP only) -------------
        vn_sq = jnp.sum(xyz * xyz, axis=-1, keepdims=True)      # (Bt, N, 1)
        vn = jnp.sqrt(vn_sq)                                    # (Bt, N, 1)

        # cos along the six axes, kernel order [+x,+y,+z,-x,-y,-z]
        # (w_dir was permuted on the host to match this order).
        cos = jnp.concatenate([xyz, -xyz], axis=-1)             # (Bt, N, 6)
        cos = jnp.maximum(cos, 0.0)
        inv_vn = pl.reciprocal(vn + 1e-8, approx=False)
        cos = cos * inv_vn
        cos = cos * cos

        dw = 1.0 - (vn_sq - ir2) * inv_span                     # (Bt, N, 1)
        dw = jnp.where(dw < 0.0, 0.0, dw)
        dw = jnp.where(vn <= 0.0, 0.0, dw)
        s_dw = jnp.sum(dw, axis=1, keepdims=True)               # (Bt, 1, 1)
        # Guard against an all-zero weight row (PyTorch would emit NaN here).
        s_dw = jnp.where(s_dw > 0.0, s_dw, 1.0)
        dw = dw * pl.reciprocal(s_dw, approx=False)
        cos_w = cos * dw                                        # (Bt, N, 6)

        # -------- re-associated direction_mlp + aggregate -------------------
        # agg[b,m] = sum_{a,c} T[b,a,c] * w_dir_perm[a*Cin + c, m]
        # with T[b,a,c] = sum_n dir_in[b,n,c] * cos_w[b,n,a].
        dir_in = jnp.concatenate([pts, xyz], axis=-1)           # (Bt, N, Cin)
        t_parts = [jnp.sum(dir_in * cos_w[..., a:a + 1], axis=1)
                   for a in range(6)]                           # 6 x (Bt, Cin)
        flat_t = jnp.concatenate(t_parts, axis=-1)              # (Bt, 6*Cin)

        agg = jnp.dot(flat_t, w_dir_ref[...],
                      preferred_element_type=jnp.float32)       # (Bt, mid)

        # direction_bn (eval, folded) + relu
        h = jnp.maximum(agg * bn1_scale_ref[...] + bn1_bias_ref[...], 0.0)
        # direction_mlp2 (no bias)
        d2 = jnp.dot(h, w2_ref[...],
                     preferred_element_type=jnp.float32)        # (Bt, out)
        # last_bn (eval, folded) + relu — applied to `direction` only,
        # matching the reference code (center branch is discarded there).
        out_ref[...] = jnp.maximum(
            d2 * bn2_scale_ref[...] + bn2_bias_ref[...], 0.0)

    return kernel


def _pick_batch_tile(B):
    for cand in (32, 16, 8):
        if B % cand == 0:
            return cand
    return B  # small / irregular batch: whole batch in one grid step


def geoconv_forward(xyz, points, params, inner_radius, outer_radius):
    B, N, feat = points.shape
    Cin = feat + 3
    mid6 = params["w_dir"].shape[1]
    mid = mid6 // 6
    out_ch = params["w2"].shape[1]

    # Host-side one-time weight permutation:
    #   w_dir_perm[a*Cin + c, m] = w_dir[c, m*6 + perm[a]]
    # with the kernel axis order [+x,+y,+z,-x,-y,-z] mapped onto the PyTorch
    # axis order [+z,-z,+y,-y,+x,-x] via perm = [4, 2, 0, 5, 3, 1].
    perm = jnp.array([4, 2, 0, 5, 3, 1], dtype=jnp.int32)
    w_dir_perm = jnp.transpose(
        params["w_dir"].reshape(Cin, mid, 6)[:, :, perm], (2, 0, 1)
    ).reshape(6 * Cin, mid)

    Bt = _pick_batch_tile(B)
    kernel = _make_geoconv_kernel(inner_radius, outer_radius)

    out = pl.pallas_call(
        kernel,
        out_shape=jax.ShapeDtypeStruct((B, out_ch), jnp.float32),
        grid_spec=pltpu.PrefetchScalarGridSpec(
            num_scalar_prefetch=0,
            grid=(B // Bt,),
            in_specs=[
                pl.BlockSpec((Bt, N, feat), lambda i: (i, 0, 0)),   # points
                pl.BlockSpec((Bt, N, 3), lambda i: (i, 0, 0)),      # xyz
                pl.BlockSpec((6 * Cin, mid), lambda i: (0, 0)),     # w_dir perm
                pl.BlockSpec((1, mid), lambda i: (0, 0)),           # bn1 scale
                pl.BlockSpec((1, mid), lambda i: (0, 0)),           # bn1 bias
                pl.BlockSpec((mid, out_ch), lambda i: (0, 0)),      # w2
                pl.BlockSpec((1, out_ch), lambda i: (0, 0)),        # bn2 scale
                pl.BlockSpec((1, out_ch), lambda i: (0, 0)),        # bn2 bias
            ],
            out_specs=pl.BlockSpec((Bt, out_ch), lambda i: (i, 0)),
        ),
        compiler_params=pltpu.CompilerParams(
            dimension_semantics=("parallel",),
            vmem_limit_bytes=32 * 1024 * 1024),
    )(points, xyz, w_dir_perm,
      params["bn1_scale"], params["bn1_bias"], params["w2"],
      params["bn2_scale"], params["bn2_bias"])
    return out


def ref_forward(xyz, points, params, inner_radius, outer_radius):
    """Pure-JAX reference mirroring the PyTorch forward (eval-mode BN)."""
    B, N, _ = points.shape
    dir_input = jnp.concatenate([points, xyz], axis=-1)
    direction = dir_input @ params["w_dir"]                      # (B, N, mid*6)
    mid = params["w_dir"].shape[1] // 6

    vn = jnp.sqrt(jnp.sum(xyz * xyz, axis=-1))                   # (B, N)
    axis = jnp.array([[0, 0, 1], [0, 0, -1], [0, 1, 0],
                      [0, -1, 0], [1, 0, 0], [-1, 0, 0]],
                     dtype=jnp.float32).T
    cos = xyz @ axis                                             # (B, N, 6)
    cos = jnp.maximum(cos, 0.0)
    cos = cos / (vn[..., None] + 1e-8)
    cos = cos ** 2
    dw = 1.0 - (vn ** 2 - inner_radius ** 2) / (outer_radius ** 2 - inner_radius ** 2)
    dw = jnp.where(dw < 0.0, 0.0, dw)
    dw = jnp.where(vn <= 0.0, 0.0, dw)
    dw = dw / jnp.sum(dw, axis=-1, keepdims=True)
    cos = cos * dw[..., None]
    d = (direction.reshape(B, N, mid, 6) * cos[:, :, None, :]).sum(-1).sum(-2)
    d = jnp.maximum(d * params["bn1_scale"] + params["bn1_bias"], 0.0)
    d = d @ params["w2"]
    return jnp.maximum(d * params["bn2_scale"] + params["bn2_bias"], 0.0)


if __name__ == "__main__":
    B, N = 2, 16
    feat = 13
    in_channel = feat + 3        # points features + xyz
    mid_channel = 8
    out_channel = 16
    inner_radius = 0.1
    outer_radius = 2.0

    key = jax.random.PRNGKey(0)
    ks = jax.random.split(key, 10)
    xyz = jax.random.uniform(ks[0], (B, N, 3), jnp.float32, -0.8, 0.8)
    points = jax.random.normal(ks[1], (B, N, feat), jnp.float32)

    params = {
        # center_mlp weights intentionally omitted: that branch is dead code
        # in the PyTorch module (output is overwritten by last_bn(direction)).
        "w_dir": 0.1 * jax.random.normal(ks[4], (in_channel, mid_channel * 6), jnp.float32),
        "w2": 0.1 * jax.random.normal(ks[5], (mid_channel, out_channel), jnp.float32),
    }
    gamma1 = 1.0 + 0.1 * jax.random.normal(ks[6], (1, mid_channel), jnp.float32)
    beta1 = 0.1 * jax.random.normal(ks[7], (1, mid_channel), jnp.float32)
    gamma2 = 1.0 + 0.1 * jax.random.normal(ks[8], (1, out_channel), jnp.float32)
    beta2 = 0.1 * jax.random.normal(ks[9], (1, out_channel), jnp.float32)
    eps = 1e-5
    # eval-mode BatchNorm1d with default running stats (mean=0, var=1) folded
    # into per-feature scale/bias.
    params["bn1_scale"] = gamma1 / jnp.sqrt(1.0 + eps)
    params["bn1_bias"] = beta1
    params["bn2_scale"] = gamma2 / jnp.sqrt(1.0 + eps)
    params["bn2_bias"] = beta2

    out = geoconv_forward(xyz, points, params, inner_radius, outer_radius)
    out = jax.block_until_ready(out)

    ref = ref_forward(xyz, points, params, inner_radius, outer_radius)
    assert out.shape == (B, out_channel)
    np.testing.assert_allclose(np.asarray(out), np.asarray(ref),
                               rtol=1e-4, atol=2e-5)
    print("KERNEL_OK")
</pallas_src>

<mosaic_0001>
module attributes {stable_mosaic.version = 11 : i64} {
  func.func @kernel(%arg0: i32, %arg1: memref<2x16x13xf32, #tpu.memory_space<vmem>>, %arg2: memref<2x16x3xf32, #tpu.memory_space<vmem>>, %arg3: memref<96x8xf32, #tpu.memory_space<vmem>>, %arg4: memref<1x8xf32, #tpu.memory_space<vmem>>, %arg5: memref<1x8xf32, #tpu.memory_space<vmem>>, %arg6: memref<8x16xf32, #tpu.memory_space<vmem>>, %arg7: memref<1x16xf32, #tpu.memory_space<vmem>>, %arg8: memref<1x16xf32, #tpu.memory_space<vmem>>, %arg9: memref<2x16xf32, #tpu.memory_space<vmem>>) attributes {dimension_semantics = [#tpu.dimension_semantics<parallel>], iteration_bounds = array<i64: 1>, scalar_prefetch = 0 : i64, scratch_operands = 0 : i64, tpu.core_type = #tpu.core_type<tc>, window_params = [{transform_indices = @transform_0, window_bounds = array<i64: 2, 16, 13>}, {transform_indices = @transform_1, window_bounds = array<i64: 2, 16, 3>}, {pipeline_mode = #tpu.pipeline_mode<synchronous>, transform_indices = @transform_2, window_bounds = array<i64: 96, 8>}, {pipeline_mode = #tpu.pipeline_mode<synchronous>, transform_indices = @transform_3, window_bounds = array<i64: 1, 8>}, {pipeline_mode = #tpu.pipeline_mode<synchronous>, transform_indices = @transform_4, window_bounds = array<i64: 1, 8>}, {pipeline_mode = #tpu.pipeline_mode<synchronous>, transform_indices = @transform_5, window_bounds = array<i64: 8, 16>}, {pipeline_mode = #tpu.pipeline_mode<synchronous>, transform_indices = @transform_6, window_bounds = array<i64: 1, 16>}, {pipeline_mode = #tpu.pipeline_mode<synchronous>, transform_indices = @transform_7, window_bounds = array<i64: 1, 16>}, {transform_indices = @transform_8, window_bounds = array<i64: 2, 16>}]} {
    %c0 = arith.constant 0 : index
    %c0_0 = arith.constant 0 : index
    %c0_1 = arith.constant 0 : index
    %0 = vector.load %arg1[%c0, %c0_0, %c0_1] : memref<2x16x13xf32, #tpu.memory_space<vmem>>, vector<2x16x13xf32>
    %c0_2 = arith.constant 0 : index
    %c0_3 = arith.constant 0 : index
    %c0_4 = arith.constant 0 : index
    %1 = vector.load %arg2[%c0_2, %c0_3, %c0_4] : memref<2x16x3xf32, #tpu.memory_space<vmem>>, vector<2x16x3xf32>
    %2 = arith.mulf %1, %1 : vector<2x16x3xf32>
    %cst = arith.constant dense<0.000000e+00> : vector<2x16xf32>
    %3 = vector.multi_reduction <add>, %2, %cst [2] : vector<2x16x3xf32> to vector<2x16xf32>
    %4 = vector.shape_cast %3 : vector<2x16xf32> to vector<2x16x1xf32>
    %5 = math.sqrt %4 : vector<2x16x1xf32>
    %cst_5 = arith.constant 0.000000e+00 : f32
    %6 = vector.broadcast %cst_5 : f32 to vector<2x16x3xf32>
    %7 = arith.subf %6, %1 : vector<2x16x3xf32>
    %8 = tpu.concatenate %1, %7 in 2 : vector<2x16x3xf32>, vector<2x16x3xf32> -> vector<2x16x6xf32>
    %cst_6 = arith.constant 0.000000e+00 : f32
    %9 = vector.broadcast %cst_6 : f32 to vector<2x16x6xf32>
    %10 = arith.maximumf %8, %9 : vector<2x16x6xf32>
    %cst_7 = arith.constant 9.99999993E-9 : f32
    %11 = vector.broadcast %cst_7 : f32 to vector<2x16x1xf32>
    %12 = arith.addf %5, %11 : vector<2x16x1xf32>
    %13 = tpu.reciprocal %12 : vector<2x16x1xf32> -> vector<2x16x1xf32>
    %14 = vector.broadcast %13 : vector<2x16x1xf32> to vector<2x16x6xf32>
    %15 = arith.mulf %10, %14 : vector<2x16x6xf32>
    %16 = arith.mulf %15, %15 : vector<2x16x6xf32>
    %cst_8 = arith.constant 0.00999999977 : f32
    %17 = vector.broadcast %cst_8 : f32 to vector<2x16x1xf32>
    %18 = arith.subf %4, %17 : vector<2x16x1xf32>
    %cst_9 = arith.constant 0.250626564 : f32
    %19 = vector.broadcast %cst_9 : f32 to vector<2x16x1xf32>
    %20 = arith.mulf %18, %19 : vector<2x16x1xf32>
    %cst_10 = arith.constant 1.000000e+00 : f32
    %21 = vector.broadcast %cst_10 : f32 to vector<2x16x1xf32>
    %22 = arith.subf %21, %20 : vector<2x16x1xf32>
    %cst_11 = arith.constant 0.000000e+00 : f32
    %23 = vector.broadcast %cst_11 : f32 to vector<2x16x1xf32>
    %24 = arith.cmpf olt, %22, %23 : vector<2x16x1xf32>
    %cst_12 = arith.constant 0.000000e+00 : f32
    %25 = vector.broadcast %cst_12 : f32 to vector<2x16x1xf32>
    %26 = arith.select %24, %25, %22 : vector<2x16x1xi1>, vector<2x16x1xf32>
    %cst_13 = arith.constant 0.000000e+00 : f32
    %27 = vector.broadcast %cst_13 : f32 to vector<2x16x1xf32>
    %28 = arith.cmpf ole, %5, %27 : vector<2x16x1xf32>
    %cst_14 = arith.constant 0.000000e+00 : f32
    %29 = vector.broadcast %cst_14 : f32 to vector<2x16x1xf32>
    %30 = arith.select %28, %29, %26 : vector<2x16x1xi1>, vector<2x16x1xf32>
    %cst_15 = arith.constant dense<0.000000e+00> : vector<2x1xf32>
    %31 = vector.multi_reduction <add>, %30, %cst_15 [1] : vector<2x16x1xf32> to vector<2x1xf32>
    %32 = vector.shape_cast %31 : vector<2x1xf32> to vector<2x1x1xf32>
    %cst_16 = arith.constant 0.000000e+00 : f32
    %33 = vector.broadcast %cst_16 : f32 to vector<2x1x1xf32>
    %34 = arith.cmpf ogt, %32, %33 : vector<2x1x1xf32>
    %cst_17 = arith.constant 1.000000e+00 : f32
    %35 = vector.broadcast %cst_17 : f32 to vector<2x1x1xf32>
    %36 = arith.select %34, %32, %35 : vector<2x1x1xi1>, vector<2x1x1xf32>
    %37 = tpu.reciprocal %36 : vector<2x1x1xf32> -> vector<2x1x1xf32>
    %38 = vector.broadcast %37 : vector<2x1x1xf32> to vector<2x16x1xf32>
    %39 = arith.mulf %30, %38 : vector<2x16x1xf32>
    %40 = vector.broadcast %39 : vector<2x16x1xf32> to vector<2x16x6xf32>
    %41 = arith.mulf %16, %40 : vector<2x16x6xf32>
    %42 = tpu.concatenate %0, %1 in 2 : vector<2x16x13xf32>, vector<2x16x3xf32> -> vector<2x16x16xf32>
    %43 = vector.extract_strided_slice %41 {offsets = [0, 0, 0], sizes = [2, 16, 1], strides = [1, 1, 1]} : vector<2x16x6xf32> to vector<2x16x1xf32>
    %44 = vector.broadcast %43 : vector<2x16x1xf32> to vector<2x16x16xf32>
    %45 = arith.mulf %42, %44 : vector<2x16x16xf32>
    %cst_18 = arith.constant dense<0.000000e+00> : vector<2x16xf32>
    %46 = vector.multi_reduction <add>, %45, %cst_18 [1] : vector<2x16x16xf32> to vector<2x16xf32>
    %47 = vector.extract_strided_slice %41 {offsets = [0, 0, 1], sizes = [2, 16, 1], strides = [1, 1, 1]} : vector<2x16x6xf32> to vector<2x16x1xf32>
    %48 = vector.broadcast %47 : vector<2x16x1xf32> to vector<2x16x16xf32>
    %49 = arith.mulf %42, %48 : vector<2x16x16xf32>
    %cst_19 = arith.constant dense<0.000000e+00> : vector<2x16xf32>
    %50 = vector.multi_reduction <add>, %49, %cst_19 [1] : vector<2x16x16xf32> to vector<2x16xf32>
    %51 = vector.extract_strided_slice %41 {offsets = [0, 0, 2], sizes = [2, 16, 1], strides = [1, 1, 1]} : vector<2x16x6xf32> to vector<2x16x1xf32>
    %52 = vector.broadcast %51 : vector<2x16x1xf32> to vector<2x16x16xf32>
    %53 = arith.mulf %42, %52 : vector<2x16x16xf32>
    %cst_20 = arith.constant dense<0.000000e+00> : vector<2x16xf32>
    %54 = vector.multi_reduction <add>, %53, %cst_20 [1] : vector<2x16x16xf32> to vector<2x16xf32>
    %55 = vector.extract_strided_slice %41 {offsets = [0, 0, 3], sizes = [2, 16, 1], strides = [1, 1, 1]} : vector<2x16x6xf32> to vector<2x16x1xf32>
    %56 = vector.broadcast %55 : vector<2x16x1xf32> to vector<2x16x16xf32>
    %57 = arith.mulf %42, %56 : vector<2x16x16xf32>
    %cst_21 = arith.constant dense<0.000000e+00> : vector<2x16xf32>
    %58 = vector.multi_reduction <add>, %57, %cst_21 [1] : vector<2x16x16xf32> to vector<2x16xf32>
    %59 = vector.extract_strided_slice %41 {offsets = [0, 0, 4], sizes = [2, 16, 1], strides = [1, 1, 1]} : vector<2x16x6xf32> to vector<2x16x1xf32>
    %60 = vector.broadcast %59 : vector<2x16x1xf32> to vector<2x16x16xf32>
    %61 = arith.mulf %42, %60 : vector<2x16x16xf32>
    %cst_22 = arith.constant dense<0.000000e+00> : vector<2x16xf32>
    %62 = vector.multi_reduction <add>, %61, %cst_22 [1] : vector<2x16x16xf32> to vector<2x16xf32>
    %63 = vector.extract_strided_slice %41 {offsets = [0, 0, 5], sizes = [2, 16, 1], strides = [1, 1, 1]} : vector<2x16x6xf32> to vector<2x16x1xf32>
    %64 = vector.broadcast %63 : vector<2x16x1xf32> to vector<2x16x16xf32>
    %65 = arith.mulf %42, %64 : vector<2x16x16xf32>
    %cst_23 = arith.constant dense<0.000000e+00> : vector<2x16xf32>
    %66 = vector.multi_reduction <add>, %65, %cst_23 [1] : vector<2x16x16xf32> to vector<2x16xf32>
    %67 = tpu.concatenate %46, %50, %54, %58, %62, %66 in 1 : vector<2x16xf32>, vector<2x16xf32>, vector<2x16xf32>, vector<2x16xf32>, vector<2x16xf32>, vector<2x16xf32> -> vector<2x96xf32>
    %c0_24 = arith.constant 0 : index
    %c0_25 = arith.constant 0 : index
    %68 = vector.load %arg3[%c0_24, %c0_25] : memref<96x8xf32, #tpu.memory_space<vmem>>, vector<96x8xf32>
    %cst_26 = arith.constant dense<0.000000e+00> : vector<2x8xf32>
    %69 = tpu.matmul %67, %68, %cst_26 {dimension_numbers = #tpu.dot_dimension_numbers<[1], [0], [0], [1], [0, 0, 1, 1], [], []>} : vector<2x96xf32>, vector<96x8xf32>, vector<2x8xf32> -> vector<2x8xf32>
    %c0_27 = arith.constant 0 : index
    %c0_28 = arith.constant 0 : index
    %70 = vector.load %arg4[%c0_27, %c0_28] : memref<1x8xf32, #tpu.memory_space<vmem>>, vector<1x8xf32>
    %71 = vector.broadcast %70 : vector<1x8xf32> to vector<2x8xf32>
    %72 = arith.mulf %69, %71 : vector<2x8xf32>
    %c0_29 = arith.constant 0 : index
    %c0_30 = arith.constant 0 : index
    %73 = vector.load %arg5[%c0_29, %c0_30] : memref<1x8xf32, #tpu.memory_space<vmem>>, vector<1x8xf32>
    %74 = vector.broadcast %73 : vector<1x8xf32> to vector<2x8xf32>
    %75 = arith.addf %72, %74 : vector<2x8xf32>
    %cst_31 = arith.constant 0.000000e+00 : f32
    %76 = vector.broadcast %cst_31 : f32 to vector<2x8xf32>
    %77 = arith.maximumf %75, %76 : vector<2x8xf32>
    %c0_32 = arith.constant 0 : index
    %c0_33 = arith.constant 0 : index
    %78 = vector.load %arg6[%c0_32, %c0_33] : memref<8x16xf32, #tpu.memory_space<vmem>>, vector<8x16xf32>
    %cst_34 = arith.constant dense<0.000000e+00> : vector<2x16xf32>
    %79 = tpu.matmul %77, %78, %cst_34 {dimension_numbers = #tpu.dot_dimension_numbers<[1], [0], [0], [1], [0, 0, 1, 1], [], []>} : vector<2x8xf32>, vector<8x16xf32>, vector<2x16xf32> -> vector<2x16xf32>
    %c0_35 = arith.constant 0 : index
    %c0_36 = arith.constant 0 : index
    %80 = vector.load %arg7[%c0_35, %c0_36] : memref<1x16xf32, #tpu.memory_space<vmem>>, vector<1x16xf32>
    %81 = vector.broadcast %80 : vector<1x16xf32> to vector<2x16xf32>
    %82 = arith.mulf %79, %81 : vector<2x16xf32>
    %c0_37 = arith.constant 0 : index
    %c0_38 = arith.constant 0 : index
    %83 = vector.load %arg8[%c0_37, %c0_38] : memref<1x16xf32, #tpu.memory_space<vmem>>, vector<1x16xf32>
    %84 = vector.broadcast %83 : vector<1x16xf32> to vector<2x16xf32>
    %85 = arith.addf %82, %84 : vector<2x16xf32>
    %cst_39 = arith.constant 0.000000e+00 : f32
    %86 = vector.broadcast %cst_39 : f32 to vector<2x16xf32>
    %87 = arith.maximumf %85, %86 : vector<2x16xf32>
    %c0_40 = arith.constant 0 : index
    %c0_41 = arith.constant 0 : index
    %88 = vector.load %arg9[%c0_40, %c0_41] : memref<2x16xf32, #tpu.memory_space<vmem>>, vector<2x16xf32>
    tpu.vector_store %arg9[%c0_40, %c0_41], %87 {strides = array<i32>} : memref<2x16xf32, #tpu.memory_space<vmem>>, vector<2x16xf32>,
    return
  }
  func.func @transform_0(%arg0: i32) -> (i32, i32, i32) {
    %c0_i32 = arith.constant 0 : i32
    %c0_i32_0 = arith.constant 0 : i32
    %c0_i32_1 = arith.constant 0 : i32
    return %arg0, %c0_i32, %c0_i32_0 : i32, i32, i32
  }
  func.func @transform_1(%arg0: i32) -> (i32, i32, i32) {
    %c0_i32 = arith.constant 0 : i32
    %c0_i32_0 = arith.constant 0 : i32
    %c0_i32_1 = arith.constant 0 : i32
    return %arg0, %c0_i32, %c0_i32_0 : i32, i32, i32
  }
  func.func @transform_2(%arg0: i32) -> (i32, i32) {
    %c0_i32 = arith.constant 0 : i32
    %c0_i32_0 = arith.constant 0 : i32
    %c0_i32_1 = arith.constant 0 : i32
    return %c0_i32, %c0_i32_0 : i32, i32
  }
  func.func @transform_3(%arg0: i32) -> (i32, i32) {
    %c0_i32 = arith.constant 0 : i32
    %c0_i32_0 = arith.constant 0 : i32
    %c0_i32_1 = arith.constant 0 : i32
    return %c0_i32, %c0_i32_0 : i32, i32
  }
  func.func @transform_4(%arg0: i32) -> (i32, i32) {
    %c0_i32 = arith.constant 0 : i32
    %c0_i32_0 = arith.constant 0 : i32
    %c0_i32_1 = arith.constant 0 : i32
    return %c0_i32, %c0_i32_0 : i32, i32
  }
  func.func @transform_5(%arg0: i32) -> (i32, i32) {
    %c0_i32 = arith.constant 0 : i32
    %c0_i32_0 = arith.constant 0 : i32
    %c0_i32_1 = arith.constant 0 : i32
    return %c0_i32, %c0_i32_0 : i32, i32
  }
  func.func @transform_6(%arg0: i32) -> (i32, i32) {
    %c0_i32 = arith.constant 0 : i32
    %c0_i32_0 = arith.constant 0 : i32
    %c0_i32_1 = arith.constant 0 : i32
    return %c0_i32, %c0_i32_0 : i32, i32
  }
  func.func @transform_7(%arg0: i32) -> (i32, i32) {
    %c0_i32 = arith.constant 0 : i32
    %c0_i32_0 = arith.constant 0 : i32
    %c0_i32_1 = arith.constant 0 : i32
    return %c0_i32, %c0_i32_0 : i32, i32
  }
  func.func @transform_8(%arg0: i32) -> (i32, i32) {
    %c0_i32 = arith.constant 0 : i32
    %c0_i32_0 = arith.constant 0 : i32
    return %arg0, %c0_i32 : i32, i32
  }
}

</mosaic_0001>

<llo_original>
// kernel: tpu_custom_call.1
$region0: #{tpu_custom_call.1}
  #allocation0 [shape = 'u32[]', space=smem, size = 0x4, offset = 0x4, fixed_abs, tag = 'smem constant byte address 0x4 - core index']
  #allocation1 [shape = 'u32[144,128]{1,0:T(1,128)}', space=vmem, size = 0x12000, scoped, tag = 'internal scratch']
  %s0 = inlined_call_operand.vmem [shape: f32[2,16,13], index: 0, kind: input, shape index: {}]
  %s1 = inlined_call_operand.vmem [shape: f32[2,16,3], index: 1, kind: input, shape index: {}]
  %s2 = inlined_call_operand.vmem [shape: f32[96,8], index: 2, kind: input, shape index: {}]
  %s3 = inlined_call_operand.vmem [shape: f32[1,8], index: 3, kind: input, shape index: {}]
  %s4 = inlined_call_operand.vmem [shape: f32[1,8], index: 4, kind: input, shape index: {}]
  %s5 = inlined_call_operand.vmem [shape: f32[8,16], index: 5, kind: input, shape index: {}]
  %s6 = inlined_call_operand.vmem [shape: f32[1,16], index: 6, kind: input, shape index: {}]
  %s7 = inlined_call_operand.vmem [shape: f32[1,16], index: 7, kind: input, shape index: {}]
  %s8 = inlined_call_operand.hbm [shape: f32[2,16], index: 8, kind: output, shape index: {}]
  %s9 = sld [smem:[#allocation0]]
  $region42: #{tpu_custom_call.1} parent=0
    _
  %s11 = ssub.s32 1, %s9
  %s12 = scalar_select 0, %s11, %s9
  $region1: #{tpu_custom_call.1} parent=0
    #allocation2 [shape = 'u8[1024]{0}', space=vmem, size = 0x400, scoped, tag = 'output window, operand 0, single buffered']
    #allocation3 [shape = 's32[1]{0}', space=sflag, size = 0x4, scoped, tag = 'scoped memory for tpu_custom_call.1']
    %13 = vsyncpa [#allocation3], 0
    // Predicated region
    $region2: #{tpu_custom_call.1} parent=1 // pred_check
      _
    $region3: #{tpu_custom_call.1} parent=1 // pred_check_branch
      %15 = sbr.rel (0) target = $region5
    $region4: #{tpu_custom_call.1} parent=1 // pred_region
      _
    $region5: #{tpu_custom_call.1} parent=1 // pred_fallthru
      _
    // Predicated region
    $region6: #{tpu_custom_call.1} parent=1 // pred_check
      _
    $region7: #{tpu_custom_call.1} parent=1 // pred_check_branch
      %17 = sbr.rel (0) target = $region9
    $region8: #{tpu_custom_call.1} parent=1 // pred_region
      _
    $region9: #{tpu_custom_call.1} parent=1 // pred_fallthru
      _
    // Predicated region
    $region10: #{tpu_custom_call.1} parent=1 // pred_check
      _
    $region11: #{tpu_custom_call.1} parent=1 // pred_check_branch
      %19 = sbr.rel (0) target = $region13
    $region12: #{tpu_custom_call.1} parent=1 // pred_region
      _
    $region13: #{tpu_custom_call.1} parent=1 // pred_fallthru
      _
    // Predicated region
    $region14: #{tpu_custom_call.1} parent=1 // pred_check
      _
    $region15: #{tpu_custom_call.1} parent=1 // pred_check_branch
      %21 = sbr.rel (0) target = $region17
    $region16: #{tpu_custom_call.1} parent=1 // pred_region
      _
    $region17: #{tpu_custom_call.1} parent=1 // pred_fallthru
      _
    // Predicated region
    $region18: #{tpu_custom_call.1} parent=1 // pred_check
      _
    $region19: #{tpu_custom_call.1} parent=1 // pred_check_branch
      %23 = sbr.rel (0) target = $region21
    $region20: #{tpu_custom_call.1} parent=1 // pred_region
      _
    $region21: #{tpu_custom_call.1} parent=1 // pred_fallthru
      _
    // Predicated region
    $region22: #{tpu_custom_call.1} parent=1 // pred_check
      _
    $region23: #{tpu_custom_call.1} parent=1 // pred_check_branch
      %25 = sbr.rel (0) target = $region25
    $region24: #{tpu_custom_call.1} parent=1 // pred_region
      _
    $region25: #{tpu_custom_call.1} parent=1 // pred_fallthru
      _
    // Predicated region
    $region26: #{tpu_custom_call.1} parent=1 // pred_check
      _
    $region27: #{tpu_custom_call.1} parent=1 // pred_check_branch
      %27 = sbr.rel (0) target = $region29
    $region28: #{tpu_custom_call.1} parent=1 // pred_region
      _
    $region29: #{tpu_custom_call.1} parent=1 // pred_fallthru
      _
    // Predicated region
    $region30: #{tpu_custom_call.1} parent=1 // pred_check
      _
    $region31: #{tpu_custom_call.1} parent=1 // pred_check_branch
      %29 = sbr.rel (0) target = $region33
    $region32: #{tpu_custom_call.1} parent=1 // pred_region
      _
    $region33: #{tpu_custom_call.1} parent=1 // pred_fallthru
      _
    %v30 = vld [vmem:[%s0] sm:$0xff]
    %v31 = vld [vmem:[%s0 + $0x8] sm:$0xff]
    %v32 = vld [vmem:[%s0 + $0x10] sm:$0xff]
    %v33 = vld [vmem:[%s0 + $0x18] sm:$0xff]
    %v34 = vld [vmem:[%s1] sm:$0xff]
    %v35 = vld [vmem:[%s1 + $0x8] sm:$0xff]
    %v36 = vld [vmem:[%s1 + $0x10] sm:$0xff]
    %v37 = vld [vmem:[%s1 + $0x18] sm:$0xff]
    %v38 = vmul.f32 %v34, %v34
    %v39 = vmul.f32 %v35, %v35
    %v40 = vmul.f32 %v36, %v36
    %v41 = vmul.f32 %v37, %v37
    %vm42 = vcmask 23552
    %v43 = vsel %vm42, %v38, 0.0
    %44 = vadd.xlane.f32.xlu0 %v43
    %v45 = vpop.xlane.xlu0 %44
    %v46 = vsel %vm42, %v39, 0.0
    %47 = vadd.xlane.f32.xlu0 %v46
    %v48 = vpop.xlane.xlu0 %47
    %v49 = vsel %vm42, %v40, 0.0
    %50 = vadd.xlane.f32.xlu0 %v49
    %v51 = vpop.xlane.xlu0 %50
    %v52 = vsel %vm42, %v41, 0.0
    %53 = vadd.xlane.f32.xlu0 %v52
    %v54 = vpop.xlane.xlu0 %53
    %v55 = vrsqrt.pop %v45
    %v56 = vmul.f32 %v45, %v55
    %vm57 = vcmp.eq.f32.partialorder %v45, inf
    %v58 = vsel %vm57, %v45, %v56
    %vm59 = vcmp.eq.f32.partialorder %v45, 0.0
    %v60 = vand.u32 %v45, 2147483648
    %v61 = vsel %vm59, %v60, %v58
    %v62 = vrsqrt.pop %v48
    %v63 = vmul.f32 %v48, %v62
    %vm64 = vcmp.eq.f32.partialorder %v48, inf
    %v65 = vsel %vm64, %v48, %v63
    %vm66 = vcmp.eq.f32.partialorder %v48, 0.0
    %v67 = vand.u32 %v48, 2147483648
    %v68 = vsel %vm66, %v67, %v65
    %v69 = vrsqrt.pop %v51
    %v70 = vmul.f32 %v51, %v69
    %vm71 = vcmp.eq.f32.partialorder %v51, inf
    %v72 = vsel %vm71, %v51, %v70
    %vm73 = vcmp.eq.f32.partialorder %v51, 0.0
    %v74 = vand.u32 %v51, 2147483648
    %v75 = vsel %vm73, %v74, %v72
    %v76 = vrsqrt.pop %v54
    %v77 = vmul.f32 %v54, %v76
    %vm78 = vcmp.eq.f32.partialorder %v54, inf
    %v79 = vsel %vm78, %v54, %v77
    %vm80 = vcmp.eq.f32.partialorder %v54, 0.0
    %v81 = vand.u32 %v54, 2147483648
    %v82 = vsel %vm80, %v81, %v79
    %v83 = vsub.f32 0.0, %v34
    %v84 = vsub.f32 0.0, %v35
    %v85 = vsub.f32 0.0, %v36
    %v86 = vsub.f32 0.0, %v37
    %91 = vrot.lane.b32.xlu0 %v83, 3
    %v92 = vpop.permute.xlu0 %91
    %93 = vrot.lane.b32.xlu0 %v84, 3
    %v94 = vpop.permute.xlu0 %93
    %95 = vrot.lane.b32.xlu0 %v85, 3
    %v96 = vpop.permute.xlu0 %95
    %97 = vrot.lane.b32.xlu0 %v86, 3
    %v98 = vpop.permute.xlu0 %97
    %v103 = vsel %vm42, %v34, %v92
    %v104 = vsel %vm42, %v35, %v94
    %v105 = vsel %vm42, %v36, %v96
    %v106 = vsel %vm42, %v37, %v98
    %v107 = vmax.f32 %v103, 0.0
    %v108 = vmax.f32 %v104, 0.0
    %v109 = vmax.f32 %v105, 0.0
    %v110 = vmax.f32 %v106, 0.0
    %v111 = vadd.f32 %v61, 1e-08
    %v112 = vadd.f32 %v68, 1e-08
    %v113 = vadd.f32 %v75, 1e-08
    %v114 = vadd.f32 %v82, 1e-08
    %v115 = vrcp.pop %v111
    %v116 = vrcp.pop %v112
    %v117 = vrcp.pop %v113
    %v118 = vrcp.pop %v114
    %v119 = vmul.f32 %v107, %v115
    %v120 = vmul.f32 %v108, %v116
    %v121 = vmul.f32 %v109, %v117
    %v122 = vmul.f32 %v110, %v118
    %v123 = vmul.f32 %v119, %v119
    %v124 = vmul.f32 %v120, %v120
    %v125 = vmul.f32 %v121, %v121
    %v126 = vmul.f32 %v122, %v122
    %v127 = vsub.f32 %v45, 0.01
    %v128 = vsub.f32 %v48, 0.01
    %v129 = vsub.f32 %v51, 0.01
    %v130 = vsub.f32 %v54, 0.01
    %v131 = vmul.f32 %v127, 0.25062656
    %v132 = vmul.f32 %v128, 0.25062656
    %v133 = vmul.f32 %v129, 0.25062656
    %v134 = vmul.f32 %v130, 0.25062656
    %v135 = vsub.f32 1.0, %v131
    %v136 = vsub.f32 1.0, %v132
    %v137 = vsub.f32 1.0, %v133
    %v138 = vsub.f32 1.0, %v134
    %vm139 = vcmp.lt.f32.partialorder %v135, 0.0
    %vm140 = vcmp.lt.f32.partialorder %v136, 0.0
    %vm141 = vcmp.lt.f32.partialorder %v137, 0.0
    %vm142 = vcmp.lt.f32.partialorder %v138, 0.0
    %v143 = vsel %vm139, 0.0, %v135
    %v144 = vsel %vm140, 0.0, %v136
    %v145 = vsel %vm141, 0.0, %v137
    %v146 = vsel %vm142, 0.0, %v138
    %vm147 = vcmp.le.f32.partialorder %v61, 0.0
    %vm148 = vcmp.le.f32.partialorder %v68, 0.0
    %vm149 = vcmp.le.f32.partialorder %v75, 0.0
    %vm150 = vcmp.le.f32.partialorder %v82, 0.0
    %v151 = vsel %vm147, 0.0, %v143
    %v152 = vsel %vm148, 0.0, %v144
    %v153 = vsel %vm149, 0.0, %v145
    %v154 = vsel %vm150, 0.0, %v146
    %v155 = vadd.f32 %v151, %v152
    %v156 = vrot.slane %v155, 4
    %v157 = vadd.f32 %v155, %v156
    %v158 = vrot.slane %v157, 2
    %v159 = vadd.f32 %v157, %v158
    %v160 = vrot.slane %v159, 1
    %v161 = vadd.f32 %v159, %v160
    %v162 = vadd.f32 %v153, %v154
    %v163 = vrot.slane %v162, 4
    %v164 = vadd.f32 %v162, %v163
    %v165 = vrot.slane %v164, 2
    %v166 = vadd.f32 %v164, %v165
    %v167 = vrot.slane %v166, 1
    %v168 = vadd.f32 %v166, %v167
    %vm169 = vcmp.gt.f32.partialorder %v161, 0.0
    %vm170 = vcmp.gt.f32.partialorder %v168, 0.0
    %v171 = vsel %vm169, %v161, 1.0
    %v172 = vsel %vm170, %v168, 1.0
    %v173 = vrcp.pop %v171
    %v174 = vrcp.pop %v172
    %v175 = vmul.f32 %v151, %v173
    %v176 = vmul.f32 %v152, %v173
    %v177 = vmul.f32 %v153, %v174
    %v178 = vmul.f32 %v154, %v174
    %v179 = vmul.f32 %v123, %v175
    %v180 = vmul.f32 %v124, %v176
    %v181 = vmul.f32 %v125, %v177
    %v182 = vmul.f32 %v126, %v178
    %187 = vrot.lane.b32.xlu0 %v34, 13
    %v188 = vpop.permute.xlu0 %187
    %189 = vrot.lane.b32.xlu0 %v35, 13
    %v190 = vpop.permute.xlu0 %189
    %191 = vrot.lane.b32.xlu0 %v36, 13
    %v192 = vpop.permute.xlu0 %191
    %193 = vrot.lane.b32.xlu0 %v37, 13
    %v194 = vpop.permute.xlu0 %193
    %vm199 = vcmask 105472
    %v200 = vsel %vm199, %v30, %v188
    %v201 = vsel %vm199, %v31, %v190
    %v202 = vsel %vm199, %v32, %v192
    %v203 = vsel %vm199, %v33, %v194
    %205 = vset.pattern.permute.xlu0 0
    %206 = vperm.xlu0 %205, %v179
    %v207 = vpop.permute.xlu0 %206
    %210 = vset.pattern.permute.xlu0 0
    %211 = vperm.xlu0 %210, %v180
    %v212 = vpop.permute.xlu0 %211
    %215 = vset.pattern.permute.xlu0 0
    %216 = vperm.xlu0 %215, %v181
    %v217 = vpop.permute.xlu0 %216
    %220 = vset.pattern.permute.xlu0 0
    %221 = vperm.xlu0 %220, %v182
    %v222 = vpop.permute.xlu0 %221
    %v224 = vmul.f32 %v200, %v207
    %v225 = vmul.f32 %v201, %v212
    %v226 = vmul.f32 %v202, %v217
    %v227 = vmul.f32 %v203, %v222
    %vm228 = vcmask 130048
    %v229 = vsel %vm228, %v224, 0.0
    %v230 = vsel %vm228, %v225, 0.0
    %v231 = vadd.f32 %v229, %v230
    %v232 = vrot.slane %v231, 4
    %v233 = vadd.f32 %v231, %v232
    %v234 = vrot.slane %v233, 2
    %v235 = vadd.f32 %v233, %v234
    %v236 = vrot.slane %v235, 1
    %v237 = vadd.f32 %v235, %v236
    %v238 = vsel %vm228, %v226, 0.0
    %v239 = vsel %vm228, %v227, 0.0
    %v240 = vadd.f32 %v238, %v239
    %v241 = vrot.slane %v240, 4
    %v242 = vadd.f32 %v240, %v241
    %v243 = vrot.slane %v242, 2
    %v244 = vadd.f32 %v242, %v243
    %v245 = vrot.slane %v244, 1
    %v246 = vadd.f32 %v244, %v245
    %247 = vset.pattern.permute.xlu0 1
    %248 = vperm.xlu0 %247, %v179
    %v249 = vpop.permute.xlu0 %248
    %251 = vset.pattern.permute.xlu0 1
    %252 = vperm.xlu0 %251, %v180
    %v253 = vpop.permute.xlu0 %252
    %255 = vset.pattern.permute.xlu0 1
    %256 = vperm.xlu0 %255, %v181
    %v257 = vpop.permute.xlu0 %256
    %259 = vset.pattern.permute.xlu0 1
    %260 = vperm.xlu0 %259, %v182
    %v261 = vpop.permute.xlu0 %260
    %v263 = vmul.f32 %v200, %v249
    %v264 = vmul.f32 %v201, %v253
    %v265 = vmul.f32 %v202, %v257
    %v266 = vmul.f32 %v203, %v261
    %v267 = vsel %vm228, %v263, 0.0
    %v268 = vsel %vm228, %v264, 0.0
    %v269 = vadd.f32 %v267, %v268
    %v270 = vrot.slane %v269, 4
    %v271 = vadd.f32 %v269, %v270
    %v272 = vrot.slane %v271, 2
    %v273 = vadd.f32 %v271, %v272
    %v274 = vrot.slane %v273, 1
    %v275 = vadd.f32 %v273, %v274
    %v276 = vsel %vm228, %v265, 0.0
    %v277 = vsel %vm228, %v266, 0.0
    %v278 = vadd.f32 %v276, %v277
    %v279 = vrot.slane %v278, 4
    %v280 = vadd.f32 %v278, %v279
    %v281 = vrot.slane %v280, 2
    %v282 = vadd.f32 %v280, %v281
    %v283 = vrot.slane %v282, 1
    %v284 = vadd.f32 %v282, %v283
    %285 = vset.pattern.permute.xlu0 2
    %286 = vperm.xlu0 %285, %v179
    %v287 = vpop.permute.xlu0 %286
    %289 = vset.pattern.permute.xlu0 2
    %290 = vperm.xlu0 %289, %v180
    %v291 = vpop.permute.xlu0 %290
    %293 = vset.pattern.permute.xlu0 2
    %294 = vperm.xlu0 %293, %v181
    %v295 = vpop.permute.xlu0 %294
    %297 = vset.pattern.permute.xlu0 2
    %298 = vperm.xlu0 %297, %v182
    %v299 = vpop.permute.xlu0 %298
    %v301 = vmul.f32 %v200, %v287
    %v302 = vmul.f32 %v201, %v291
    %v303 = vmul.f32 %v202, %v295
    %v304 = vmul.f32 %v203, %v299
    %v305 = vsel %vm228, %v301, 0.0
    %v306 = vsel %vm228, %v302, 0.0
    %v307 = vadd.f32 %v305, %v306
    %v308 = vrot.slane %v307, 4
    %v309 = vadd.f32 %v307, %v308
    %v310 = vrot.slane %v309, 2
    %v311 = vadd.f32 %v309, %v310
    %v312 = vrot.slane %v311, 1
    %v313 = vadd.f32 %v311, %v312
    %v314 = vsel %vm228, %v303, 0.0
    %v315 = vsel %vm228, %v304, 0.0
    %v316 = vadd.f32 %v314, %v315
    %v317 = vrot.slane %v316, 4
    %v318 = vadd.f32 %v316, %v317
    %v319 = vrot.slane %v318, 2
    %v320 = vadd.f32 %v318, %v319
    %v321 = vrot.slane %v320, 1
    %v322 = vadd.f32 %v320, %v321
    %323 = vset.pattern.permute.xlu0 3
    %324 = vperm.xlu0 %323, %v179
    %v325 = vpop.permute.xlu0 %324
    %327 = vset.pattern.permute.xlu0 3
    %328 = vperm.xlu0 %327, %v180
    %v329 = vpop.permute.xlu0 %328
    %331 = vset.pattern.permute.xlu0 3
    %332 = vperm.xlu0 %331, %v181
    %v333 = vpop.permute.xlu0 %332
    %335 = vset.pattern.permute.xlu0 3
    %336 = vperm.xlu0 %335, %v182
    %v337 = vpop.permute.xlu0 %336
    %v339 = vmul.f32 %v200, %v325
    %v340 = vmul.f32 %v201, %v329
    %v341 = vmul.f32 %v202, %v333
    %v342 = vmul.f32 %v203, %v337
    %v343 = vsel %vm228, %v339, 0.0
    %v344 = vsel %vm228, %v340, 0.0
    %v345 = vadd.f32 %v343, %v344
    %v346 = vrot.slane %v345, 4
    %v347 = vadd.f32 %v345, %v346
    %v348 = vrot.slane %v347, 2
    %v349 = vadd.f32 %v347, %v348
    %v350 = vrot.slane %v349, 1
    %v351 = vadd.f32 %v349, %v350
    %v352 = vsel %vm228, %v341, 0.0
    %v353 = vsel %vm228, %v342, 0.0
    %v354 = vadd.f32 %v352, %v353
    %v355 = vrot.slane %v354, 4
    %v356 = vadd.f32 %v354, %v355
    %v357 = vrot.slane %v356, 2
    %v358 = vadd.f32 %v356, %v357
    %v359 = vrot.slane %v358, 1
    %v360 = vadd.f32 %v358, %v359
    %361 = vset.pattern.permute.xlu0 4
    %362 = vperm.xlu0 %361, %v179
    %v363 = vpop.permute.xlu0 %362
    %365 = vset.pattern.permute.xlu0 4
    %366 = vperm.xlu0 %365, %v180
    %v367 = vpop.permute.xlu0 %366
    %369 = vset.pattern.permute.xlu0 4
    %370 = vperm.xlu0 %369, %v181
    %v371 = vpop.permute.xlu0 %370
    %373 = vset.pattern.permute.xlu0 4
    %374 = vperm.xlu0 %373, %v182
    %v375 = vpop.permute.xlu0 %374
    %v377 = vmul.f32 %v200, %v363
    %v378 = vmul.f32 %v201, %v367
    %v379 = vmul.f32 %v202, %v371
    %v380 = vmul.f32 %v203, %v375
    %v381 = vsel %vm228, %v377, 0.0
    %v382 = vsel %vm228, %v378, 0.0
    %v383 = vadd.f32 %v381, %v382
    %v384 = vrot.slane %v383, 4
    %v385 = vadd.f32 %v383, %v384
    %v386 = vrot.slane %v385, 2
    %v387 = vadd.f32 %v385, %v386
    %v388 = vrot.slane %v387, 1
    %v389 = vadd.f32 %v387, %v388
    %v390 = vsel %vm228, %v379, 0.0
    %v391 = vsel %vm228, %v380, 0.0
    %v392 = vadd.f32 %v390, %v391
    %v393 = vrot.slane %v392, 4
    %v394 = vadd.f32 %v392, %v393
    %v395 = vrot.slane %v394, 2
    %v396 = vadd.f32 %v394, %v395
    %v397 = vrot.slane %v396, 1
    %v398 = vadd.f32 %v396, %v397
    %399 = vset.pattern.permute.xlu0 5
    %400 = vperm.xlu0 %399, %v179
    %v401 = vpop.permute.xlu0 %400
    %403 = vset.pattern.permute.xlu0 5
    %404 = vperm.xlu0 %403, %v180
    %v405 = vpop.permute.xlu0 %404
    %407 = vset.pattern.permute.xlu0 5
    %408 = vperm.xlu0 %407, %v181
    %v409 = vpop.permute.xlu0 %408
    %411 = vset.pattern.permute.xlu0 5
    %412 = vperm.xlu0 %411, %v182
    %v413 = vpop.permute.xlu0 %412
    %v415 = vmul.f32 %v200, %v401
    %v416 = vmul.f32 %v201, %v405
    %v417 = vmul.f32 %v202, %v409
    %v418 = vmul.f32 %v203, %v413
    %v419 = vsel %vm228, %v415, 0.0
    %v420 = vsel %vm228, %v416, 0.0
    %v421 = vadd.f32 %v419, %v420
    %v422 = vrot.slane %v421, 4
    %v423 = vadd.f32 %v421, %v422
    %v424 = vrot.slane %v423, 2
    %v425 = vadd.f32 %v423, %v424
    %v426 = vrot.slane %v425, 1
    %v427 = vadd.f32 %v425, %v426
    %v428 = vsel %vm228, %v417, 0.0
    %v429 = vsel %vm228, %v418, 0.0
    %v430 = vadd.f32 %v428, %v429
    %v431 = vrot.slane %v430, 4
    %v432 = vadd.f32 %v430, %v431
    %v433 = vrot.slane %v432, 2
    %v434 = vadd.f32 %v432, %v433
    %v435 = vrot.slane %v434, 1
    %v436 = vadd.f32 %v434, %v435
    %vm439 = vcmask 1041409
    %v440 = vsel %vm439, %v246, %v237
    %v444 = vsel %vm439, %v284, %v275
    %445 = vrot.lane.b32.xlu0 %v444, 16
    %v446 = vpop.permute.xlu0 %445
    %v450 = vsel %vm439, %v322, %v313
    %451 = vrot.lane.b32.xlu0 %v450, 32
    %v452 = vpop.permute.xlu0 %451
    %v456 = vsel %vm439, %v360, %v351
    %457 = vrot.lane.b32.xlu0 %v456, 48
    %v458 = vpop.permute.xlu0 %457
    %v462 = vsel %vm439, %v398, %v389
    %463 = vrot.lane.b32.xlu0 %v462, 64
    %v464 = vpop.permute.xlu0 %463
    %v468 = vsel %vm439, %v436, %v427
    %469 = vrot.lane.b32.xlu0 %v468, 80
    %v470 = vpop.permute.xlu0 %469
    %v472 = vsel %vm228, %v440, %v446
    %vm473 = vcmask 261120
    %v474 = vsel %vm473, %v472, %v452
    %vm475 = vcmask 392192
    %v476 = vsel %vm475, %v474, %v458
    %vm477 = vcmask 523264
    %v478 = vsel %vm477, %v476, %v464
    %vm479 = vcmask 654336
    %v480 = vsel %vm479, %v478, %v470
    %v481 = vld [vmem:[%s2] sm:$0xff]
    %v482 = vld [vmem:[%s2 + $0x8] sm:$0xff]
    %v483 = vld [vmem:[%s2 + $0x10] sm:$0xff]
    %v484 = vld [vmem:[%s2 + $0x18] sm:$0xff]
    %v485 = vld [vmem:[%s2 + $0x20] sm:$0xff]
    %v486 = vld [vmem:[%s2 + $0x28] sm:$0xff]
    %v487 = vld [vmem:[%s2 + $0x30] sm:$0xff]
    %v488 = vld [vmem:[%s2 + $0x38] sm:$0xff]
    %v489 = vld [vmem:[%s2 + $0x40] sm:$0xff]
    %v490 = vld [vmem:[%s2 + $0x48] sm:$0xff]
    %v491 = vld [vmem:[%s2 + $0x50] sm:$0xff]
    %v492 = vld [vmem:[%s2 + $0x58] sm:$0xff]
    %vm493 = vcmask 785408
    %v495 = vsel %vm493, %v480, 0
    %497 = vmatprep.subr.mxu0 0.0
    %498 = vmatpush1.msra.mxu0 0.0
    %499 = vmatprep.subr.mxu0 0.0
    %500 = vmatpush1.msra.mxu0 0.0
    %501 = vmatprep.subr.mxu0 0.0
    %502 = vmatpush1.msra.mxu0 0.0
    %503 = vmatprep.subr.mxu0 0.0
    %504 = vmatpush1.msra.mxu0 0.0
    %505 = vmatprep.subr.mxu0 0.0
    %506 = vmatpush1.msra.mxu0 %v492
    %507 = vmatprep.subr.mxu0 0.0
    %508 = vmatpush1.msra.mxu0 %v491
    %509 = vmatprep.subr.mxu0 0.0
    %510 = vmatpush1.msra.mxu0 %v490
    %511 = vmatprep.subr.mxu0 0.0
    %512 = vmatpush1.msra.mxu0 %v489
    %513 = vmatprep.subr.mxu0 0.0
    %514 = vmatpush1.msra.mxu0 %v488
    %515 = vmatprep.subr.mxu0 0.0
    %516 = vmatpush1.msra.mxu0 %v487
    %517 = vmatprep.subr.mxu0 0.0
    %518 = vmatpush1.msra.mxu0 %v486
    %519 = vmatprep.subr.mxu0 0.0
    %520 = vmatpush1.msra.mxu0 %v485
    %521 = vmatprep.subr.mxu0 0.0
    %522 = vmatpush1.msra.mxu0 %v484
    %523 = vmatprep.subr.mxu0 0.0
    %524 = vmatpush1.msra.mxu0 %v483
    %525 = vmatprep.subr.mxu0 0.0
    %526 = vmatpush1.msra.mxu0 %v482
    %527 = vmatprep.subr.mxu0 0.0
    %528 = vmatpush1.msra.mxu0 %v481
    %529 = vmatprep.subr.mxu0 0.0
    %530 = vmatpush2.msra.mxu0 0.0
    %531 = vmatprep.subr.mxu0 0.0
    %532 = vmatpush2.msra.mxu0 0.0
    %533 = vmatprep.subr.mxu0 0.0
    %534 = vmatpush2.msra.mxu0 0.0
    %535 = vmatprep.subr.mxu0 0.0
    %536 = vmatpush2.msra.mxu0 0.0
    %537 = vmatprep.subr.mxu0 0.0
    %538 = vmatpush2.msra.mxu0 0.0
    %539 = vmatprep.subr.mxu0 0.0
    %540 = vmatpush2.msra.mxu0 0.0
    %541 = vmatprep.subr.mxu0 0.0
    %542 = vmatpush2.msra.mxu0 0.0
    %543 = vmatprep.subr.mxu0 0.0
    %544 = vmatpush2.msra.mxu0 0.0
    %545 = vmatprep.subr.mxu0 0.0
    %546 = vmatpush2.msra.mxu0 0.0
    %547 = vmatprep.subr.mxu0 0.0
    %548 = vmatpush2.msra.mxu0 0.0
    %549 = vmatprep.subr.mxu0 0.0
    %550 = vmatpush2.msra.mxu0 0.0
    %551 = vmatprep.subr.mxu0 0.0
    %552 = vmatpush2.msra.mxu0 0.0
    %553 = vmatprep.subr.mxu0 0.0
    %554 = vmatpush2.msra.mxu0 0.0
    %555 = vmatprep.subr.mxu0 0.0
    %556 = vmatpush2.msra.mxu0 0.0
    %557 = vmatprep.subr.mxu0 0.0
    %558 = vmatpush2.msra.mxu0 0.0
    %559 = vmatprep.subr.mxu0 0.0
    %560 = vmatpush2.msra.mxu0 0.0
    %561 = vmatprep.mubr.f32.mxu0 0.0
    %562 = vmatmul.mubr.f32.gmra.mxu0 %v495
    %v563 = vpop.f32.mrf.mxu0
    %v564 = vadd.f32 0.0, %v563
    %v565 = vpop.f32.mrf.mxu0
    %566 = vdwg.mxu0
    %v567 = vld [vmem:[%s3] sm:$0x1]
    %v569 = vlaneseq
    %v570 = vshrl.u32 %v569, 7
    %v571 = vsub.s32 0, %v570
    %v572 = vrot.slane %v567, %v571
    %v574 = vmul.f32 %v564, %v572
    %v575 = vld [vmem:[%s4] sm:$0x1]
    %v577 = vlaneseq
    %v578 = vshrl.u32 %v577, 7
    %v579 = vsub.s32 0, %v578
    %v580 = vrot.slane %v575, %v579
    %v582 = vadd.f32 %v574, %v580
    %v583 = vmax.f32 %v582, 0.0
    %v584 = vld [vmem:[%s5] sm:$0xff]
    %vm585 = vcmask 64512
    %v587 = vsel %vm585, %v583, 0
    %589 = vmatprep.subr.mxu0 0.0
    %590 = vmatpush1.msra.mxu0 0.0
    %591 = vmatprep.subr.mxu0 0.0
    %592 = vmatpush1.msra.mxu0 0.0
    %593 = vmatprep.subr.mxu0 0.0
    %594 = vmatpush1.msra.mxu0 0.0
    %595 = vmatprep.subr.mxu0 0.0
    %596 = vmatpush1.msra.mxu0 0.0
    %597 = vmatprep.subr.mxu0 0.0
    %598 = vmatpush1.msra.mxu0 0.0
    %599 = vmatprep.subr.mxu0 0.0
    %600 = vmatpush1.msra.mxu0 0.0
    %601 = vmatprep.subr.mxu0 0.0
    %602 = vmatpush1.msra.mxu0 0.0
    %603 = vmatprep.subr.mxu0 0.0
    %604 = vmatpush1.msra.mxu0 0.0
    %605 = vmatprep.subr.mxu0 0.0
    %606 = vmatpush1.msra.mxu0 0.0
    %607 = vmatprep.subr.mxu0 0.0
    %608 = vmatpush1.msra.mxu0 0.0
    %609 = vmatprep.subr.mxu0 0.0
    %610 = vmatpush1.msra.mxu0 0.0
    %611 = vmatprep.subr.mxu0 0.0
    %612 = vmatpush1.msra.mxu0 0.0
    %613 = vmatprep.subr.mxu0 0.0
    %614 = vmatpush1.msra.mxu0 0.0
    %615 = vmatprep.subr.mxu0 0.0
    %616 = vmatpush1.msra.mxu0 0.0
    %617 = vmatprep.subr.mxu0 0.0
    %618 = vmatpush1.msra.mxu0 0.0
    %619 = vmatprep.subr.mxu0 0.0
    %620 = vmatpush1.msra.mxu0 %v584
    %621 = vmatprep.subr.mxu0 0.0
    %622 = vmatpush2.msra.mxu0 0.0
    %623 = vmatprep.subr.mxu0 0.0
    %624 = vmatpush2.msra.mxu0 0.0
    %625 = vmatprep.subr.mxu0 0.0
    %626 = vmatpush2.msra.mxu0 0.0
    %627 = vmatprep.subr.mxu0 0.0
    %628 = vmatpush2.msra.mxu0 0.0
    %629 = vmatprep.subr.mxu0 0.0
    %630 = vmatpush2.msra.mxu0 0.0
    %631 = vmatprep.subr.mxu0 0.0
    %632 = vmatpush2.msra.mxu0 0.0
    %633 = vmatprep.subr.mxu0 0.0
    %634 = vmatpush2.msra.mxu0 0.0
    %635 = vmatprep.subr.mxu0 0.0
    %636 = vmatpush2.msra.mxu0 0.0
    %637 = vmatprep.subr.mxu0 0.0
    %638 = vmatpush2.msra.mxu0 0.0
    %639 = vmatprep.subr.mxu0 0.0
    %640 = vmatpush2.msra.mxu0 0.0
    %641 = vmatprep.subr.mxu0 0.0
    %642 = vmatpush2.msra.mxu0 0.0
    %643 = vmatprep.subr.mxu0 0.0
    %644 = vmatpush2.msra.mxu0 0.0
    %645 = vmatprep.subr.mxu0 0.0
    %646 = vmatpush2.msra.mxu0 0.0
    %647 = vmatprep.subr.mxu0 0.0
    %648 = vmatpush2.msra.mxu0 0.0
    %649 = vmatprep.subr.mxu0 0.0
    %650 = vmatpush2.msra.mxu0 0.0
    %651 = vmatprep.subr.mxu0 0.0
    %652 = vmatpush2.msra.mxu0 0.0
    %653 = vmatprep.mubr.f32.mxu0 0.0
    %654 = vmatmul.mubr.f32.gmra.mxu0 %v587
    %v655 = vpop.f32.mrf.mxu0
    %v656 = vadd.f32 0.0, %v655
    %v657 = vpop.f32.mrf.mxu0
    %658 = vdwg.mxu0
    %v659 = vld [vmem:[%s6] sm:$0x1]
    %v661 = vlaneseq
    %v662 = vshrl.u32 %v661, 7
    %v663 = vsub.s32 0, %v662
    %v664 = vrot.slane %v659, %v663
    %v666 = vmul.f32 %v656, %v664
    %v667 = vld [vmem:[%s7] sm:$0x1]
    %v669 = vlaneseq
    %v670 = vshrl.u32 %v669, 7
    %v671 = vsub.s32 0, %v670
    %v672 = vrot.slane %v667, %v671
    %v674 = vadd.f32 %v666, %v672
    %v675 = vmax.f32 %v674, 0.0
    %vm676 = vcmask 123904
    %677 = vst.msk [vmem:[#allocation2] sm:$0x3] %vm676, %v675
    // Predicated region
    $region34: #{tpu_custom_call.1} parent=1 // pred_check
      _
    $region35: #{tpu_custom_call.1} parent=1 // pred_check_branch
      %679 = sbr.rel (0) target = $region37
    $region36: #{tpu_custom_call.1} parent=1 // pred_region
      %s681 = ssub.s32 32, 32
      %682 = vsyncadd [#allocation3], %s681
      %s684 = sshll.u32 [#allocation2], 4
      %s685 = int_to_ptr.vmem [resolvable:$true] %s684
      %687 = dma.vmem_to_hbm [thread:$0]  %s685, 32, %s8, [#allocation3]
    $region37: #{tpu_custom_call.1} parent=1 // pred_fallthru
      _
    // Predicated region
    $region38: #{tpu_custom_call.1} parent=1 // pred_check
      _
    $region39: #{tpu_custom_call.1} parent=1 // pred_check_branch
      %689 = sbr.rel (0) target = $region41
    $region40: #{tpu_custom_call.1} parent=1 // pred_region
      %690 = dma.done [#allocation3], 32
    $region41: #{tpu_custom_call.1} parent=1 // pred_fallthru
      _
    %691 = vsyncpa [#allocation3], 1

</llo_original>
